<compile_context>
chip_gen: v7x
topology: tpu7x:2x2x1
jax: 0.10.0
libtpu: 0.0.40
codegen_flags: <defaults>
</compile_context>

<pallas_src>
import jax
import jax.numpy as jnp
from jax import lax
from jax.experimental import pallas as pl
from jax.experimental.pallas import tpu as pltpu

PADDING_INDEX = 999.0
PADDING_IDX_INT = 999
DIST_THRESHOLD = 7.0
DIST2_THRESHOLD = DIST_THRESHOLD * DIST_THRESHOLD

# per-atom feature channel layout (lane axis, 8 channels):
#   0..2 : x, y, z
#   3    : |c|^2
#   4    : is_donor
#   5    : is_acceptor | is_aromatic
#   6    : is_padding
#   7    : unused (zero-pad so the MXU contraction is K=8)
_NUM_FEAT = 8
_CH_XYZ = 3


def _round_up(x, m):
    return (x + m - 1) // m * m


def _pick_tile(L):
    # multiples of 256 preferred for the 2x256 MXU (v6e/v7x); 128 ok for v5e.
    for t in (512, 256, 128):
        if L % t == 0:
            return t
    return L


# ---------------------------------------------------------------------------
# Kernel 1: pairwise interaction mask (getPairwiseRepresentation hot path)
#   row side : (T, 8)  atom-major features of atoms i
#   col side : (8, T)  component-major (lane-dense) features of atoms j
#   output   : (T, T)  int8 contact mask
# ---------------------------------------------------------------------------
def _pairwise_kernel(r_ref, ct_ref, mask_ref):
    R = r_ref[...]            # (TI, 8)
    CT = ct_ref[...]          # (8, TJ)
    TI = R.shape[0]
    TJ = CT.shape[1]

    # --- squared distance via the Gram identity on the MXU -------------------
    ch = lax.broadcasted_iota(jnp.int32, (1, R.shape[1]), 1)
    R_xyz = jnp.where(ch < _CH_XYZ, R, 0.0)        # keep xyz only, K padded to 8
    G = jnp.dot(R_xyz, CT, preferred_element_type=jnp.float32)     # (TI, TJ)
    d2 = jnp.maximum(R[:, 3:4] + CT[3:4, :] - 2.0 * G, 0.0)
    # NOTE: torch pairwise_distance adds eps=1e-6 per component; negligible for
    # the <= 7A threshold so it is dropped here (mask-identical in practice).

    # --- boolean interaction algebra (simplified) -----------------------------
    d_i = R[:, 4:5] > 0.5      # (TI, 1) donor(row)
    aa_i = R[:, 5:6] > 0.5     # (TI, 1) acceptor|aromatic(row)
    p_i = R[:, 6:7] > 0.5      # (TI, 1) padding(row)
    d_j = CT[4:5, :] > 0.5     # (1, TJ) donor(col)
    aa_j = CT[5:6, :] > 0.5    # (1, TJ) acceptor|aromatic(col)
    p_j = CT[6:7, :] > 0.5     # (1, TJ) padding(col)

    X = d_j & aa_i             # donor_acceptor_mask | donor_aromatic_mask
    Y = d_i & aa_j             # ...Other
    not_y = ~Y

    ro = pl.program_id(1) * TI
    co = pl.program_id(2) * TJ
    row = lax.broadcasted_iota(jnp.int32, (TI, TJ), 0) + ro
    col = lax.broadcasted_iota(jnp.int32, (TI, TJ), 1) + co
    tri = col > row            # torch.triu(..., diagonal=1)

    hb_or_tri = (tri & (X | not_y)) | ((~tri) & X & not_y)
    final = (hb_or_tri & (row != col) & (~p_i) & (~p_j)
             & (d2 <= DIST2_THRESHOLD))
    mask_ref[...] = jnp.where(final, 1.0, 0.0).astype(jnp.int8)


def pairwise_interactions(feat, featT):
    B, L, F = feat.shape
    T = _pick_tile(L)
    grid = (B, L // T, L // T)
    return pl.pallas_call(
        _pairwise_kernel,
        out_shape=jax.ShapeDtypeStruct((B, L, L), jnp.int8),
        grid=grid,
        in_specs=[
            pl.BlockSpec((None, T, F), lambda b, i, j: (b, i, 0)),   # row atoms
            pl.BlockSpec((None, F, T), lambda b, i, j: (b, 0, j)),   # col atoms
        ],
        out_specs=pl.BlockSpec((None, T, T), lambda b, i, j: (b, i, j)),
        compiler_params=pltpu.CompilerParams(
            dimension_semantics=("parallel", "parallel", "parallel")),
    )(feat, featT)


# ---------------------------------------------------------------------------
# Kernel 2: dihedral components (math_utils.dihedral2dVectors hot path)
#   input  : (12, Npad) component-major points  [p0.xyz | p1.xyz | p2.xyz | p3.xyz]
#   output : (2,  Npad) rows [y; x] for atan2 (done in glue)
# TODO(synk): madrax's exact math_utils.dihedral2dVectors is not provided;
#             the standard dihedral formula is used.
# ---------------------------------------------------------------------------
def _dihedral_kernel(p_ref, out_ref):
    p = p_ref[...]                      # (12, Npad)

    def pt(k):
        return (p[3 * k + 0:3 * k + 1, :],
                p[3 * k + 1:3 * k + 2, :],
                p[3 * k + 2:3 * k + 3, :])

    p0x, p0y, p0z = pt(0)
    p1x, p1y, p1z = pt(1)
    p2x, p2y, p2z = pt(2)
    p3x, p3y, p3z = pt(3)

    u1x, u1y, u1z = p1x - p0x, p1y - p0y, p1z - p0z
    u2x, u2y, u2z = p2x - p1x, p2y - p1y, p2z - p1z
    u3x, u3y, u3z = p3x - p2x, p3y - p2y, p3z - p2z

    # n1 = u1 x u2, n2 = u2 x u3
    n1x = u1y * u2z - u1z * u2y
    n1y = u1z * u2x - u1x * u2z
    n1z = u1x * u2y - u1y * u2x
    n2x = u2y * u3z - u2z * u3y
    n2y = u2z * u3x - u2x * u3z
    n2z = u2x * u3y - u2y * u3x

    inv_u2 = lax.rsqrt(u2x * u2x + u2y * u2y + u2z * u2z + 1e-12)
    # m1 = n1 x u2_hat
    m1x = (n1y * u2z - n1z * u2y) * inv_u2
    m1y = (n1z * u2x - n1x * u2z) * inv_u2
    m1z = (n1x * u2y - n1y * u2x) * inv_u2

    x = n1x * n2x + n1y * n2y + n1z * n2z
    y = m1x * n2x + m1y * n2y + m1z * n2z
    out_ref[...] = jnp.concatenate([y, x], axis=0)      # (2, Npad)


def dihedral_components(points_cm):
    _, Npad = points_cm.shape
    return pl.pallas_call(
        _dihedral_kernel,
        out_shape=jax.ShapeDtypeStruct((2, Npad), jnp.float32),
    )(points_cm)


# ---------------------------------------------------------------------------
# Kernel 3: fused per-residue energy construction + score_min + final assembly
#   base : (1, Np)  per-residue contact degree (lane-dense on residues)
#   aw   : (A, 1)   alternative/mutant side-chain weights
#   aw2  : (A, 1)
#   mcw  : (16, 1)  main-chain / extra weights (11 used, rest 0)
#   out  : (16, Np) energy terms on sublanes, residues on lanes
# ---------------------------------------------------------------------------
def _assembly_kernel(base_ref, aw_ref, aw2_ref, mcw_ref, out_ref):
    base = base_ref[...]        # (1, Np)
    aw = aw_ref[...]            # (A, 1)
    aw2 = aw2_ref[...]          # (A, 1)
    mcw = mcw_ref[...]          # (16, 1)

    hb = (-0.05 * base) * aw                 # hbondSC          (A, Np)
    cl = (0.02 * base) * (2.0 - aw)          # residueClash     (A, Np)
    el = (-0.01 * base) * aw2                # residueElectroSC (A, Np)

    tot = hb + cl + el                       # tot = electroSC + hbondSC + clash
    A_dim = tot.shape[0]
    tmin = jnp.min(tot, axis=0, keepdims=True)
    sub = lax.broadcasted_iota(jnp.int32, tot.shape, 0)
    first = jnp.min(jnp.where(tot <= tmin, sub, A_dim), axis=0, keepdims=True)
    sel = (sub == first).astype(base.dtype)  # first-min tie break (torch.min)

    hb_m = jnp.sum(hb * sel, axis=0, keepdims=True)   # score_min(hbondSC, -1, tot)
    cl_m = jnp.sum(cl * sel, axis=0, keepdims=True)   # score_min(residueClash, ...)
    el_m = jnp.sum(el * sel, axis=0, keepdims=True)   # score_min(residueElectroSC, ...)

    misc = mcw * base                                 # (16, Np)

    def m(k):
        return misc[k:k + 1, :]

    zero = jnp.zeros_like(base)
    out = jnp.concatenate([
        m(0),            # 0  disulfide bonds
        hb_m + m(1),     # 1  hbonds = residueHbondSC + hbondMC
        m(2) + el_m,     # 2  electro = residueElectroMC + residueElectroSC
        cl_m,            # 3  VdW clashes
        m(3),            # 4  polar solvation
        m(4),            # 5  hydrophobic solvation
        m(5) + m(6),     # 6  VdW = vdwEnergyMC + vdwEnergySC
        m(7),            # 7  backbone entropy (entropyMC)
        m(8),            # 8  side-chain entropy
        m(9),            # 9  peptide bond violations
        m(10),           # 10 rotamer violation
        zero, zero, zero, zero, zero,    # sublane padding to 16
    ], axis=0)
    out_ref[...] = out


def assemble_energies(base_row, alt_w_col, alt_w2_col, mcw_col):
    _, Np = base_row.shape
    return pl.pallas_call(
        _assembly_kernel,
        out_shape=jax.ShapeDtypeStruct((16, Np), jnp.float32),
    )(base_row, alt_w_col, alt_w2_col, mcw_col)


# ---------------------------------------------------------------------------
# ForceField.forward (synthetic, Pallas-backed)
# ---------------------------------------------------------------------------
def forcefield_forward(coordinates, at_name, angle_indices,
                       donor_ids, acceptor_ids, aromatic_ids,
                       R, APR, A, mc_weights, alt_weights, alt_weights2):
    B, L, _ = coordinates.shape
    C = M = 1
    N = B * C * R * M

    # --- glue: packed per-atom features (one array, two views) ---------------
    def member(x, s):
        return (x[..., None] == s[None, None, :]).any(-1)

    is_donor = member(at_name, donor_ids)
    is_acc = member(at_name, acceptor_ids)
    is_aro = member(at_name, aromatic_ids)
    is_pad = coordinates[..., 0] == PADDING_INDEX

    xyz = coordinates.astype(jnp.float32)
    r2 = jnp.sum(xyz * xyz, axis=-1, keepdims=True)
    flt = lambda b: b[..., None].astype(jnp.float32)
    feat = jnp.concatenate(
        [xyz, r2, flt(is_donor), flt(is_acc | is_aro), flt(is_pad),
         jnp.zeros((B, L, 1), jnp.float32)], axis=-1)              # (B, L, 8)
    featT = jnp.swapaxes(feat, 1, 2)                               # (B, 8, L)

    # --- Pallas: tiled pairwise interaction mask (int8) ----------------------
    pair_mask = pairwise_interactions(feat, featT)                 # (B, L, L) int8

    # --- Pallas: dihedral angles (lane-dense) ---------------------------------
    flat_idx = angle_indices.reshape(-1, 4)
    Nang = flat_idx.shape[0]
    exists = jnp.all(flat_idx != PADDING_IDX_INT, axis=-1)
    safe_idx = jnp.where(exists[:, None], flat_idx, 0)
    coords_flat = coordinates.reshape(B * L, 3)
    pts = coords_flat[safe_idx.reshape(-1)].reshape(Nang, 12)      # (Nang, 12)
    Na_pad = _round_up(Nang, 128)
    pts_cm = jnp.pad(pts.T.astype(jnp.float32), ((0, 0), (0, Na_pad - Nang)))
    yx = dihedral_components(pts_cm)                               # (2, Na_pad)
    flat_angles = jnp.arctan2(yx[0, :Nang], yx[1, :Nang])
    angles = jnp.where(exists, flat_angles, PADDING_INDEX).reshape(
        angle_indices.shape[:-1])

    # --- stand-in per-residue base term from pairwise contacts ----------------
    # TODO(synk): real submodule energies not reproducible without madrax internals.
    pm = pair_mask.astype(jnp.float32)        # f32 accumulation of the int8 mask
    deg = pm.sum(axis=2) + pm.sum(axis=1)                          # (B, L)
    base = deg.reshape(B, R, APR).sum(-1).reshape(N).astype(jnp.float32)

    Np = _round_up(N, 128)
    base_row = jnp.pad(base, (0, Np - N)).reshape(1, Np)
    alt_w_col = alt_weights.reshape(A, 1).astype(jnp.float32)
    alt_w2_col = alt_weights2.reshape(A, 1).astype(jnp.float32)
    mcw_col = jnp.pad(mc_weights.astype(jnp.float32),
                      (0, 16 - mc_weights.shape[0])).reshape(16, 1)

    # --- Pallas: fused energy build + score_min + 11-term assembly -----------
    out = assemble_energies(base_row, alt_w_col, alt_w2_col, mcw_col)  # (16, Np)
    final_energy = out[:11, :N].T.reshape(B, C, R, M, 11)
    return final_energy, angles, pair_mask


if __name__ == "__main__":
    key = jax.random.PRNGKey(0)
    B, L = 2, 128                 # proteins, atoms per protein
    R, APR = 16, 8                # residues, atoms per residue (L = R*APR)
    A = 8                         # alternative / mutant side-chain dim for score_min
    k1, k2, k3, k4, k5 = jax.random.split(key, 5)

    coordinates = jax.random.uniform(k1, (B, L, 3), jnp.float32, minval=0.0, maxval=20.0)
    pad_atoms = jnp.arange(L) >= (L - 8)                  # last 8 atoms are padding
    coordinates = jnp.where(pad_atoms[None, :, None], PADDING_INDEX, coordinates)

    at_name = jax.random.randint(k2, (B, L), 0, 40)
    # deterministic stand-ins for hashings-derived donor/acceptor/aromatic sets
    donor_ids = jnp.array([1, 2, 3, 5, 8, 13], jnp.int32)
    acceptor_ids = jnp.array([2, 4, 7, 9, 17], jnp.int32)
    aromatic_ids = jnp.array([6, 11, 23], jnp.int32)

    # dihedral angle indices into the flattened (B*L) atom list; last residue padded
    res_base = (jnp.arange(B)[:, None] * L + jnp.arange(R)[None, :] * APR)   # (B, R)
    angle_indices = res_base[..., None] + jnp.arange(4)[None, None, :]       # (B, R, 4)
    angle_indices = angle_indices.at[:, -1, :].set(PADDING_IDX_INT)

    # deterministic stand-in "weights" (the real module loads a checkpoint)
    mc_weights = jax.random.uniform(k3, (11,), jnp.float32, minval=-0.1, maxval=0.1)
    alt_weights = jax.random.uniform(k4, (1, A), jnp.float32, minval=0.8, maxval=1.2)
    alt_weights2 = jax.random.uniform(k5, (1, A), jnp.float32, minval=0.5, maxval=1.5)

    final_energy, angles, pair_mask = forcefield_forward(
        coordinates, at_name, angle_indices,
        donor_ids, acceptor_ids, aromatic_ids,
        R, APR, A, mc_weights, alt_weights, alt_weights2)

    jax.block_until_ready(final_energy)
    jax.block_until_ready(angles)
    jax.block_until_ready(pair_mask)
    assert final_energy.shape == (B, 1, R, 1, 11)
    assert angles.shape == (B, R)
    assert pair_mask.shape == (B, L, L) and pair_mask.dtype == jnp.int8
    assert bool(jnp.all(jnp.isfinite(final_energy)))
    print("KERNEL_OK")
</pallas_src>

<mosaic_0001>
module attributes {stable_mosaic.version = 11 : i64} {
  func.func @_pairwise_kernel(%arg0: i32, %arg1: i32, %arg2: i32, %arg3: memref<1x128x8xf32, #tpu.memory_space<vmem>>, %arg4: memref<1x8x128xf32, #tpu.memory_space<vmem>>, %arg5: memref<1x128x128xi8, #tpu.memory_space<vmem>>) attributes {dimension_semantics = [#tpu.dimension_semantics<parallel>, #tpu.dimension_semantics<parallel>, #tpu.dimension_semantics<parallel>], iteration_bounds = array<i64: 2, 1, 1>, scalar_prefetch = 0 : i64, scratch_operands = 0 : i64, tpu.core_type = #tpu.core_type<tc>, window_params = [{transform_indices = @transform_0, window_bounds = array<i64: 1, 128, 8>}, {transform_indices = @transform_1, window_bounds = array<i64: 1, 8, 128>}, {transform_indices = @transform_2, window_bounds = array<i64: 1, 128, 128>}]} {
    %c0 = arith.constant 0 : index
    %c0_0 = arith.constant 0 : index
    %c0_1 = arith.constant 0 : index
    %0 = vector.load %arg3[%c0, %c0_0, %c0_1] : memref<1x128x8xf32, #tpu.memory_space<vmem>>, vector<1x128x8xf32>
    %1 = vector.shape_cast %0 : vector<1x128x8xf32> to vector<128x8xf32>
    %c0_2 = arith.constant 0 : index
    %c0_3 = arith.constant 0 : index
    %c0_4 = arith.constant 0 : index
    %2 = vector.load %arg4[%c0_2, %c0_3, %c0_4] : memref<1x8x128xf32, #tpu.memory_space<vmem>>, vector<1x8x128xf32>
    %3 = vector.shape_cast %2 : vector<1x8x128xf32> to vector<8x128xf32>
    %4 = tpu.iota {dimensions = array<i32: 1>} : vector<1x8xi32>
    %c3_i32 = arith.constant 3 : i32
    %5 = vector.broadcast %c3_i32 : i32 to vector<1x8xi32>
    %6 = arith.cmpi slt, %4, %5 : vector<1x8xi32>
    %cst = arith.constant 0.000000e+00 : f32
    %7 = vector.shape_cast %6 : vector<1x8xi1> to vector<1x8xi1>
    %8 = vector.broadcast %7 : vector<1x8xi1> to vector<128x8xi1>
    %9 = vector.broadcast %cst : f32 to vector<128x8xf32>
    %10 = arith.select %8, %1, %9 : vector<128x8xi1>, vector<128x8xf32>
    %cst_5 = arith.constant dense<0.000000e+00> : vector<128x128xf32>
    %11 = tpu.matmul %10, %3, %cst_5 {dimension_numbers = #tpu.dot_dimension_numbers<[1], [0], [0], [1], [0, 0, 1, 1], [], []>} : vector<128x8xf32>, vector<8x128xf32>, vector<128x128xf32> -> vector<128x128xf32>
    %12 = vector.extract_strided_slice %1 {offsets = [0, 3], sizes = [128, 1], strides = [1, 1]} : vector<128x8xf32> to vector<128x1xf32>
    %13 = vector.extract_strided_slice %3 {offsets = [3, 0], sizes = [1, 128], strides = [1, 1]} : vector<8x128xf32> to vector<1x128xf32>
    %14 = vector.broadcast %12 : vector<128x1xf32> to vector<128x128xf32>
    %15 = vector.broadcast %13 : vector<1x128xf32> to vector<128x128xf32>
    %16 = arith.addf %14, %15 : vector<128x128xf32>
    %cst_6 = arith.constant 2.000000e+00 : f32
    %17 = vector.broadcast %cst_6 : f32 to vector<128x128xf32>
    %18 = arith.mulf %17, %11 : vector<128x128xf32>
    %19 = arith.subf %16, %18 : vector<128x128xf32>
    %cst_7 = arith.constant 0.000000e+00 : f32
    %20 = vector.broadcast %cst_7 : f32 to vector<128x128xf32>
    %21 = arith.maximumf %19, %20 : vector<128x128xf32>
    %22 = vector.extract_strided_slice %1 {offsets = [0, 4], sizes = [128, 1], strides = [1, 1]} : vector<128x8xf32> to vector<128x1xf32>
    %cst_8 = arith.constant 5.000000e-01 : f32
    %23 = vector.broadcast %cst_8 : f32 to vector<128x1xf32>
    %24 = arith.cmpf ogt, %22, %23 : vector<128x1xf32>
    %25 = vector.extract_strided_slice %1 {offsets = [0, 5], sizes = [128, 1], strides = [1, 1]} : vector<128x8xf32> to vector<128x1xf32>
    %cst_9 = arith.constant 5.000000e-01 : f32
    %26 = vector.broadcast %cst_9 : f32 to vector<128x1xf32>
    %27 = arith.cmpf ogt, %25, %26 : vector<128x1xf32>
    %28 = vector.extract_strided_slice %1 {offsets = [0, 6], sizes = [128, 1], strides = [1, 1]} : vector<128x8xf32> to vector<128x1xf32>
    %cst_10 = arith.constant 5.000000e-01 : f32
    %29 = vector.broadcast %cst_10 : f32 to vector<128x1xf32>
    %30 = arith.cmpf ogt, %28, %29 : vector<128x1xf32>
    %31 = vector.extract_strided_slice %3 {offsets = [4, 0], sizes = [1, 128], strides = [1, 1]} : vector<8x128xf32> to vector<1x128xf32>
    %cst_11 = arith.constant 5.000000e-01 : f32
    %32 = vector.broadcast %cst_11 : f32 to vector<1x128xf32>
    %33 = arith.cmpf ogt, %31, %32 : vector<1x128xf32>
    %34 = vector.extract_strided_slice %3 {offsets = [5, 0], sizes = [1, 128], strides = [1, 1]} : vector<8x128xf32> to vector<1x128xf32>
    %cst_12 = arith.constant 5.000000e-01 : f32
    %35 = vector.broadcast %cst_12 : f32 to vector<1x128xf32>
    %36 = arith.cmpf ogt, %34, %35 : vector<1x128xf32>
    %37 = vector.extract_strided_slice %3 {offsets = [6, 0], sizes = [1, 128], strides = [1, 1]} : vector<8x128xf32> to vector<1x128xf32>
    %cst_13 = arith.constant 5.000000e-01 : f32
    %38 = vector.broadcast %cst_13 : f32 to vector<1x128xf32>
    %39 = arith.cmpf ogt, %37, %38 : vector<1x128xf32>
    %40 = vector.broadcast %33 : vector<1x128xi1> to vector<128x128xi1>
    %41 = vector.broadcast %27 : vector<128x1xi1> to vector<128x128xi1>
    %42 = arith.andi %40, %41 : vector<128x128xi1>
    %43 = vector.broadcast %24 : vector<128x1xi1> to vector<128x128xi1>
    %44 = vector.broadcast %36 : vector<1x128xi1> to vector<128x128xi1>
    %45 = arith.andi %43, %44 : vector<128x128xi1>
    %cst_14 = arith.constant dense<true> : vector<128x128xi1>
    %46 = arith.xori %45, %cst_14 : vector<128x128xi1>
    %c128_i32 = arith.constant 128 : i32
    %47 = arith.muli %arg1, %c128_i32 : i32
    %c128_i32_15 = arith.constant 128 : i32
    %48 = arith.muli %arg2, %c128_i32_15 : i32
    %49 = tpu.iota {dimensions = array<i32: 0>} : vector<128x128xi32>
    %50 = vector.broadcast %47 : i32 to vector<128x128xi32>
    %51 = arith.addi %49, %50 : vector<128x128xi32>
    %52 = tpu.iota {dimensions = array<i32: 1>} : vector<128x128xi32>
    %53 = vector.broadcast %48 : i32 to vector<128x128xi32>
    %54 = arith.addi %52, %53 : vector<128x128xi32>
    %55 = arith.cmpi sgt, %54, %51 : vector<128x128xi32>
    %56 = arith.ori %42, %46 : vector<128x128xi1>
    %57 = arith.andi %55, %56 : vector<128x128xi1>
    %cst_16 = arith.constant dense<true> : vector<128x128xi1>
    %58 = arith.xori %55, %cst_16 : vector<128x128xi1>
    %59 = arith.andi %58, %42 : vector<128x128xi1>
    %60 = arith.andi %59, %46 : vector<128x128xi1>
    %61 = arith.ori %57, %60 : vector<128x128xi1>
    %62 = arith.cmpi ne, %51, %54 : vector<128x128xi32>
    %63 = arith.andi %61, %62 : vector<128x128xi1>
    %cst_17 = arith.constant dense<true> : vector<128x1xi1>
    %64 = arith.xori %30, %cst_17 : vector<128x1xi1>
    %65 = vector.broadcast %64 : vector<128x1xi1> to vector<128x128xi1>
    %66 = arith.andi %63, %65 : vector<128x128xi1>
    %cst_18 = arith.constant dense<true> : vector<1x128xi1>
    %67 = arith.xori %39, %cst_18 : vector<1x128xi1>
    %68 = vector.broadcast %67 : vector<1x128xi1> to vector<128x128xi1>
    %69 = arith.andi %66, %68 : vector<128x128xi1>
    %cst_19 = arith.constant 4.900000e+01 : f32
    %70 = vector.broadcast %cst_19 : f32 to vector<128x128xf32>
    %71 = arith.cmpf ole, %21, %70 : vector<128x128xf32>
    %72 = arith.andi %69, %71 : vector<128x128xi1>
    %cst_20 = arith.constant 1.000000e+00 : f32
    %cst_21 = arith.constant 0.000000e+00 : f32
    %73 = vector.broadcast %cst_20 : f32 to vector<128x128xf32>
    %74 = vector.broadcast %cst_21 : f32 to vector<128x128xf32>
    %75 = arith.select %72, %73, %74 : vector<128x128xi1>, vector<128x128xf32>
    %76 = arith.fptosi %75 : vector<128x128xf32> to vector<128x128xi8>
    %c0_22 = arith.constant 0 : index
    %c0_23 = arith.constant 0 : index
    %c0_24 = arith.constant 0 : index
    %77 = vector.load %arg5[%c0_22, %c0_23, %c0_24] : memref<1x128x128xi8, #tpu.memory_space<vmem>>, vector<1x128x128xi8>
    %78 = vector.shape_cast %77 : vector<1x128x128xi8> to vector<128x128xi8>
    %79 = vector.shape_cast %76 : vector<128x128xi8> to vector<1x128x128xi8>
    tpu.vector_store %arg5[%c0_22, %c0_23, %c0_24], %79 {strides = array<i32>} : memref<1x128x128xi8, #tpu.memory_space<vmem>>, vector<1x128x128xi8>,
    return
  }
  func.func @transform_0(%arg0: i32, %arg1: i32, %arg2: i32) -> (i32, i32, i32) {
    %c0_i32 = arith.constant 0 : i32
    %c0_i32_0 = arith.constant 0 : i32
    return %arg0, %arg1, %c0_i32 : i32, i32, i32
  }
  func.func @transform_1(%arg0: i32, %arg1: i32, %arg2: i32) -> (i32, i32, i32) {
    %c0_i32 = arith.constant 0 : i32
    %c0_i32_0 = arith.constant 0 : i32
    return %arg0, %c0_i32, %arg2 : i32, i32, i32
  }
  func.func @transform_2(%arg0: i32, %arg1: i32, %arg2: i32) -> (i32, i32, i32) {
    %c0_i32 = arith.constant 0 : i32
    return %arg0, %arg1, %arg2 : i32, i32, i32
  }
}

</mosaic_0001>

<llo_original>
// kernel: tpu_custom_call.1
$region0: #{tpu_custom_call.1}
  #allocation0 [shape = 'u32[]', space=smem, size = 0x4, offset = 0x4, fixed_abs, tag = 'smem constant byte address 0x4 - core index']
  #allocation1 [shape = 'u32[144,128]{1,0:T(1,128)}', space=vmem, size = 0x12000, scoped, tag = 'internal scratch']
  %s0 = inlined_call_operand.vmem [shape: f32[2,128,8], index: 0, kind: input, shape index: {}]
  %s1 = inlined_call_operand.vmem [shape: f32[2,8,128], index: 1, kind: input, shape index: {}]
  %s2 = inlined_call_operand.hbm [shape: s8[2,128,128], index: 2, kind: output, shape index: {}]
  %s3 = sld [smem:[#allocation0]]
  $region41: #{tpu_custom_call.1} parent=0
    _
  %s5 = ssub.s32 1, %s3
  %s6 = scalar_select 0, %s5, %s3
  $region1: #{tpu_custom_call.1} parent=0
    #allocation2 [shape = 'u8[32768]{0}', space=vmem, size = 0x8000, scoped, tag = 'output window, operand 0']
    #allocation3 [shape = 's32[2]{0}', space=sflag, size = 0x8, scoped, tag = 'scoped memory for tpu_custom_call.1']
    %7 = vsyncpa [#allocation3], 0
    %s8 = scalar_lea.sflag [#allocation3], 1
    %9 = vsyncpa %s8, 0
    loop: start=0, step=1, limit=4
    $region2: #{tpu_custom_call.1} parent=1 // loop_pre_header
      _
    $region3: #{tpu_custom_call.1} parent=1 // loop_header
      %s11 = sphi 0, %s15
      %p12 = scmp.ge.s32.totalorder %s11, 4
      %s18 = sphi 0, %s37
      %s19 = sphi 0, %s33
      %s20 = sphi 0, %s29
      %s21 = sphi 0, %s18
      %s22 = sphi 0, %s19
      %s23 = sphi 0, %s20
      %s24 = sphi 0, %s21
      %s25 = sphi 0, %s22
      %s26 = sphi 0, %s23
      %s42 = sphi 0, %s44
      %s45 = sphi 0, %s42
      %s46 = sphi 0, %s45
      %s62 = sphi 0, %s46
      %s70 = sphi 0, %s72
      %s73 = sphi 0, %s70
      %s74 = sphi 0, %s73
      %s90 = sphi 0, %s74
      %s100 = sphi 0, %s102
      %s103 = sphi 0, %s100
      %s104 = sphi 0, %s103
      %s120 = sphi 0, %s104
    $region4: #{tpu_custom_call.1} parent=1 // loop_header_branch
      %14 = sbr.rel (%p12) target = $region8
    $region5: #{tpu_custom_call.1} parent=1 // loop_body
      %s16 = ssub.s32 %s11, 1
      %s17 = ssub.s32 %s11, 2
      %s27 = sadd.s32 1, %s20
      %p28 = scmp.ge.s32.totalorder %s27, 1
      %s29 = scalar_select %p28, 0, %s27
      %s30 = sadd.s32 1, %s19
      %s31 = scalar_select %p28, %s30, %s19
      %p32 = scmp.ge.s32.totalorder %s31, 1
      %s33 = scalar_select %p32, 0, %s31
      %s34 = sadd.s32 1, %s18
      %s35 = scalar_select %p32, %s34, %s18
      %p36 = scmp.ge.s32.totalorder %s35, 2
      %s37 = scalar_select %p36, 0, %s35
      %s38 = ssub.s32 %s18, %s37
      %s39 = ssub.s32 %s19, %s33
      %s40 = sor.u32 %s38, %s39
      %p41 = scmp.eq.s32.totalorder %s40, 0
      %s43 = sadd.s32 %s42, 1
      %s44 = scalar_select %p41, %s42, %s43
      %p47 = pneg %p41
      %p48 = scmp.eq.s32.totalorder %s11, 1
      %p49 = por %p47, %p48
      %p50 = scmp.ne.s32.totalorder %s42, %s45
      %p51 = scmp.eq.s32.totalorder %s11, 0
      %p52 = por %p50, %p51
      %p53 = scmp.ne.s32.totalorder %s42, %s45
      %p54 = scmp.eq.s32.totalorder %s16, 1
      %p55 = por %p53, %p54
      %p56 = scmp.ne.s32.totalorder %s45, %s46
      %p57 = scmp.eq.s32.totalorder %s16, 0
      %p58 = por %p56, %p57
      %p59 = scmp.ne.s32.totalorder %s45, %s46
      %p60 = scmp.eq.s32.totalorder %s17, 1
      %p61 = por %p59, %p60
      %p63 = scmp.ne.s32.totalorder %s46, %s62
      %p64 = scmp.eq.s32.totalorder %s17, 0
      %p65 = por %p63, %p64
      %s66 = ssub.s32 %s18, %s37
      %s67 = ssub.s32 %s20, %s29
      %s68 = sor.u32 %s66, %s67
      %p69 = scmp.eq.s32.totalorder %s68, 0
      %s71 = sadd.s32 %s70, 1
      %s72 = scalar_select %p69, %s70, %s71
      %p75 = pneg %p69
      %p76 = scmp.eq.s32.totalorder %s11, 1
      %p77 = por %p75, %p76
      %p78 = scmp.ne.s32.totalorder %s70, %s73
      %p79 = scmp.eq.s32.totalorder %s11, 0
      %p80 = por %p78, %p79
      %p81 = scmp.ne.s32.totalorder %s70, %s73
      %p82 = scmp.eq.s32.totalorder %s16, 1
      %p83 = por %p81, %p82
      %p84 = scmp.ne.s32.totalorder %s73, %s74
      %p85 = scmp.eq.s32.totalorder %s16, 0
      %p86 = por %p84, %p85
      %p87 = scmp.ne.s32.totalorder %s73, %s74
      %p88 = scmp.eq.s32.totalorder %s17, 1
      %p89 = por %p87, %p88
      %p91 = scmp.ne.s32.totalorder %s74, %s90
      %p92 = scmp.eq.s32.totalorder %s17, 0
      %p93 = por %p91, %p92
      %s94 = ssub.s32 %s18, %s37
      %s95 = ssub.s32 %s19, %s33
      %s96 = sor.u32 %s94, %s95
      %s97 = ssub.s32 %s20, %s29
      %s98 = sor.u32 %s96, %s97
      %p99 = scmp.eq.s32.totalorder %s98, 0
      %s101 = sadd.s32 %s100, 1
      %s102 = scalar_select %p99, %s100, %s101
      %p105 = pneg %p99
      %p106 = scmp.eq.s32.totalorder %s11, 1
      %p107 = por %p105, %p106
      %p108 = scmp.ne.s32.totalorder %s100, %s103
      %p109 = scmp.eq.s32.totalorder %s11, 0
      %p110 = por %p108, %p109
      %p111 = scmp.ne.s32.totalorder %s100, %s103
      %p112 = scmp.eq.s32.totalorder %s16, 1
      %p113 = por %p111, %p112
      %p114 = scmp.ne.s32.totalorder %s103, %s104
      %p115 = scmp.eq.s32.totalorder %s16, 0
      %p116 = por %p114, %p115
      %p117 = scmp.ne.s32.totalorder %s103, %s104
      %p118 = scmp.eq.s32.totalorder %s17, 1
      %p119 = por %p117, %p118
      %p121 = scmp.ne.s32.totalorder %s104, %s120
      %p122 = scmp.eq.s32.totalorder %s17, 0
      %p123 = por %p121, %p122
      %p124 = scmp.le.s32.totalorder 1, %s11
      %p125 = scmp.lt.s32.totalorder %s11, 3
      %p126 = pnand %p124, %p125
      %p127 = pneg %p126
      // Predicated region
      $region9: #{tpu_custom_call.1} parent=5 // pred_check
        _
      $region10: #{tpu_custom_call.1} parent=5 // pred_check_branch
        %129 = sbr.rel (%p126) target = $region12
      $region11: #{tpu_custom_call.1} parent=5 // pred_region
        %s130 = ssub.s32 %s11, 1
      $region12: #{tpu_custom_call.1} parent=5 // pred_fallthru
        _
      %p131 = scmp.lt.s32.totalorder %s11, 2
      // Predicated region
      $region13: #{tpu_custom_call.1} parent=5 // pred_check
        %p132 = pneg %p131
      $region14: #{tpu_custom_call.1} parent=5 // pred_check_branch
        %134 = sbr.rel (%p132) target = $region16
      $region15: #{tpu_custom_call.1} parent=5 // pred_region
        // Predicated region
        $region17: #{tpu_custom_call.1} parent=15 // pred_check
          %p135 = pneg %p52
        $region18: #{tpu_custom_call.1} parent=15 // pred_check_branch
          %137 = sbr.rel (%p135) target = $region20
        $region19: #{tpu_custom_call.1} parent=15 // pred_region
          %s138 = smul.u32 16, %s19
          %p139 = scmp.lt.s32.totalorder %s18, 1
          %s140 = scalar_select %p139, %s18, 1
          %p141 = scmp.lt.s32.totalorder %s138, 15
          %s142 = scalar_select %p141, %s138, 15
          %s143 = smul.addr %s140, 16
          %s144 = sadd.s32 %s142, %s143
          %s145 = smul.addr %s144, 8
          %s146 = scalar_lea.vmem %s0, %s145
          %s147 = smul.u32 16, %s19
        $region20: #{tpu_custom_call.1} parent=15 // pred_fallthru
          _
        // Predicated region
        $region21: #{tpu_custom_call.1} parent=15 // pred_check
          %p148 = pneg %p80
        $region22: #{tpu_custom_call.1} parent=15 // pred_check_branch
          %150 = sbr.rel (%p148) target = $region24
        $region23: #{tpu_custom_call.1} parent=15 // pred_region
          %p151 = scmp.lt.s32.totalorder %s18, 1
          %s152 = scalar_select %p151, %s18, 1
          %p153 = scmp.lt.s32.totalorder %s20, 0
          %s154 = scalar_select %p153, %s20, 0
          %s155 = sadd.s32 %s154, %s152
          %s156 = smul.addr %s155, 8
          %s157 = scalar_lea.vmem %s1, %s156
        $region24: #{tpu_custom_call.1} parent=15 // pred_fallthru
          _
      $region16: #{tpu_custom_call.1} parent=5 // pred_fallthru
        _
      %p158 = scmp.le.s32.totalorder 1, %s11
      %p159 = scmp.lt.s32.totalorder %s11, 3
      %p160 = pnand %p158, %p159
      %p161 = pneg %p160
      // Predicated region
      $region25: #{tpu_custom_call.1} parent=5 // pred_check
        _
      $region26: #{tpu_custom_call.1} parent=5 // pred_check_branch
        %163 = sbr.rel (%p160) target = $region28
      $region27: #{tpu_custom_call.1} parent=5 // pred_region
        %s164 = ssub.s32 %s11, 1
        %s165 = smul.u32 16, %s22
        %p166 = scmp.lt.s32.totalorder %s21, 1
        %s167 = scalar_select %p166, %s21, 1
        %p168 = scmp.lt.s32.totalorder %s165, 15
        %s169 = scalar_select %p168, %s165, 15
        %s170 = smul.addr %s167, 16
        %s171 = sadd.s32 %s169, %s170
        %s172 = smul.addr %s171, 8
        %s173 = scalar_lea.vmem %s0, %s172
        %p174 = pneg %p58
        %p175 = pneg %p55
        %p176 = scmp.lt.s32.totalorder %s21, 1
        %s177 = scalar_select %p176, %s21, 1
        %p178 = scmp.lt.s32.totalorder %s23, 0
        %s179 = scalar_select %p178, %s23, 0
        %s180 = sadd.s32 %s179, %s177
        %s181 = smul.addr %s180, 8
        %s182 = scalar_lea.vmem %s1, %s181
        %p183 = pneg %p86
        %p184 = pneg %p83
        %p185 = pneg %p116
        %p186 = pneg %p113
        %s187 = sand.u32 %s103, 1
        %s188 = scalar_lea.sflag [#allocation3], %s187
        %s189 = sand.u32 %s103, 1
        %s190 = smul.addr %s189, 32
        %s191 = scalar_lea.vmem [#allocation2], %s190
        %s192 = smul.u32 16, %s22
        %p193 = scmp.lt.s32.totalorder %s21, 1
        %s194 = scalar_select %p193, %s21, 1
        %p195 = scmp.lt.s32.totalorder %s192, 15
        %s196 = scalar_select %p195, %s192, 15
        %s197 = smul.addr %s194, 16
        %s198 = sadd.s32 %s196, %s197
        %s199 = smul.addr %s198, 8
        %s200 = scalar_lea.vmem %s0, %s199
        %s201 = smul.u32 16, %s22
        %p202 = scmp.lt.s32.totalorder %s21, 1
        %s203 = scalar_select %p202, %s21, 1
        %p204 = scmp.lt.s32.totalorder %s23, 0
        %s205 = scalar_select %p204, %s23, 0
        %s206 = sadd.s32 %s205, %s203
        %s207 = smul.addr %s206, 8
        %s208 = scalar_lea.vmem %s1, %s207
        %s209 = smul.u32 4, %s22
        %v210 = vld [vmem:[%s200] sm:$0xff]
        %v211 = vld [vmem:[%s200 + $0x8] sm:$0xff]
        %v212 = vld [vmem:[%s200 + $0x10] sm:$0xff]
        %v213 = vld [vmem:[%s200 + $0x18] sm:$0xff]
        %v214 = vld [vmem:[%s200 + $0x20] sm:$0xff]
        %v215 = vld [vmem:[%s200 + $0x28] sm:$0xff]
        %v216 = vld [vmem:[%s200 + $0x30] sm:$0xff]
        %v217 = vld [vmem:[%s200 + $0x38] sm:$0xff]
        %v218 = vld [vmem:[%s200 + $0x40] sm:$0xff]
        %v219 = vld [vmem:[%s200 + $0x48] sm:$0xff]
        %v220 = vld [vmem:[%s200 + $0x50] sm:$0xff]
        %v221 = vld [vmem:[%s200 + $0x58] sm:$0xff]
        %v222 = vld [vmem:[%s200 + $0x60] sm:$0xff]
        %v223 = vld [vmem:[%s200 + $0x68] sm:$0xff]
        %v224 = vld [vmem:[%s200 + $0x70] sm:$0xff]
        %v225 = vld [vmem:[%s200 + $0x78] sm:$0xff]
        %v226 = vld [vmem:[%s208] sm:$0xff]
        %v227 = vlaneseq
        %v228 = vand.u32 %v227, 127
        %vm229 = vcmp.lt.s32.totalorder %v228, 3
        %v230 = vsel %vm229, 1, 0
        %vm231 = vcmp.eq.s32.totalorder %v230, 1
        %v232 = vsel %vm231, %v210, 0.0
        %v233 = vsel %vm231, %v211, 0.0
        %v234 = vsel %vm231, %v212, 0.0
        %v235 = vsel %vm231, %v213, 0.0
        %v236 = vsel %vm231, %v214, 0.0
        %v237 = vsel %vm231, %v215, 0.0
        %v238 = vsel %vm231, %v216, 0.0
        %v239 = vsel %vm231, %v217, 0.0
        %v240 = vsel %vm231, %v218, 0.0
        %v241 = vsel %vm231, %v219, 0.0
        %v242 = vsel %vm231, %v220, 0.0
        %v243 = vsel %vm231, %v221, 0.0
        %v244 = vsel %vm231, %v222, 0.0
        %v245 = vsel %vm231, %v223, 0.0
        %v246 = vsel %vm231, %v224, 0.0
        %v247 = vsel %vm231, %v225, 0.0
        %vm248 = vcmask 64512
        %v250 = vsel %vm248, %v232, 0
        %v253 = vsel %vm248, %v233, 0
        %v256 = vsel %vm248, %v234, 0
        %v259 = vsel %vm248, %v235, 0
        %v262 = vsel %vm248, %v236, 0
        %v265 = vsel %vm248, %v237, 0
        %v268 = vsel %vm248, %v238, 0
        %v271 = vsel %vm248, %v239, 0
        %v274 = vsel %vm248, %v240, 0
        %v277 = vsel %vm248, %v241, 0
        %v280 = vsel %vm248, %v242, 0
        %v283 = vsel %vm248, %v243, 0
        %v286 = vsel %vm248, %v244, 0
        %v289 = vsel %vm248, %v245, 0
        %v292 = vsel %vm248, %v246, 0
        %v295 = vsel %vm248, %v247, 0
        %297 = vmatprep.subr.mxu0 0.0
        %298 = vmatpush1.msra.mxu0 %v226
        %299 = vmatprep.subr.mxu0 0.0
        %300 = vmatpush1.msra.mxu0 0.0
        %301 = vmatprep.subr.mxu0 0.0
        %302 = vmatpush1.msra.mxu0 0.0
        %303 = vmatprep.subr.mxu0 0.0
        %304 = vmatpush1.msra.mxu0 0.0
        %305 = vmatprep.subr.mxu0 0.0
        %306 = vmatpush1.msra.mxu0 0.0
        %307 = vmatprep.subr.mxu0 0.0
        %308 = vmatpush1.msra.mxu0 0.0
        %309 = vmatprep.subr.mxu0 0.0
        %310 = vmatpush1.msra.mxu0 0.0
        %311 = vmatprep.subr.mxu0 0.0
        %312 = vmatpush1.msra.mxu0 0.0
        %313 = vmatprep.subr.mxu0 0.0
        %314 = vmatpush1.msra.mxu0 0.0
        %315 = vmatprep.subr.mxu0 0.0
        %316 = vmatpush1.msra.mxu0 0.0
        %317 = vmatprep.subr.mxu0 0.0
        %318 = vmatpush1.msra.mxu0 0.0
        %319 = vmatprep.subr.mxu0 0.0
        %320 = vmatpush1.msra.mxu0 0.0
        %321 = vmatprep.subr.mxu0 0.0
        %322 = vmatpush1.msra.mxu0 0.0
        %323 = vmatprep.subr.mxu0 0.0
        %324 = vmatpush1.msra.mxu0 0.0
        %325 = vmatprep.subr.mxu0 0.0
        %326 = vmatpush1.msra.mxu0 0.0
        %327 = vmatprep.subr.mxu0 0.0
        %328 = vmatpush1.msra.mxu0 0.0
        %329 = vmatprep.subr.mxu0 0.0
        %330 = vmatpush1.msra.mxu0 0.0
        %331 = vmatprep.subr.mxu0 0.0
        %332 = vmatpush1.msra.mxu0 0.0
        %333 = vmatprep.subr.mxu0 0.0
        %334 = vmatpush1.msra.mxu0 0.0
        %335 = vmatprep.subr.mxu0 0.0
        %336 = vmatpush1.msra.mxu0 0.0
        %337 = vmatprep.subr.mxu0 0.0
        %338 = vmatpush1.msra.mxu0 0.0
        %339 = vmatprep.subr.mxu0 0.0
        %340 = vmatpush1.msra.mxu0 0.0
        %341 = vmatprep.subr.mxu0 0.0
        %342 = vmatpush1.msra.mxu0 0.0
        %343 = vmatprep.subr.mxu0 0.0
        %344 = vmatpush1.msra.mxu0 0.0
        %345 = vmatprep.subr.mxu0 0.0
        %346 = vmatpush1.msra.mxu0 0.0
        %347 = vmatprep.subr.mxu0 0.0
        %348 = vmatpush1.msra.mxu0 0.0
        %349 = vmatprep.subr.mxu0 0.0
        %350 = vmatpush1.msra.mxu0 0.0
        %351 = vmatprep.subr.mxu0 0.0
        %352 = vmatpush1.msra.mxu0 0.0
        %353 = vmatprep.subr.mxu0 0.0
        %354 = vmatpush1.msra.mxu0 0.0
        %355 = vmatprep.subr.mxu0 0.0
        %356 = vmatpush1.msra.mxu0 0.0
        %357 = vmatprep.subr.mxu0 0.0
        %358 = vmatpush1.msra.mxu0 0.0
        %359 = vmatprep.subr.mxu0 0.0
        %360 = vmatpush1.msra.mxu0 0.0
        %361 = vmatprep.mubr.f32.mxu0 0.0
        %362 = vmatmul.mubr.f32.gmra.mrb[0].mxu0 %v250
        %v363 = vpop.f32.mrb[0].mxu0
        %v364 = vadd.f32 0.0, %v363
        %v365 = vpop.f32.mrb[0].mxu0
        %366 = vmatprep.mubr.f32.mxu0 0.0
        %367 = vmatmul.mubr.f32.gmra.mrb[0].mxu0 %v253
        %v368 = vpop.f32.mrb[0].mxu0
        %v369 = vadd.f32 0.0, %v368
        %v370 = vpop.f32.mrb[0].mxu0
        %371 = vmatprep.mubr.f32.mxu0 0.0
        %372 = vmatmul.mubr.f32.gmra.mrb[0].mxu0 %v256
        %v373 = vpop.f32.mrb[0].mxu0
        %v374 = vadd.f32 0.0, %v373
        %v375 = vpop.f32.mrb[0].mxu0
        %376 = vmatprep.mubr.f32.mxu0 0.0
        %377 = vmatmul.mubr.f32.gmra.mrb[0].mxu0 %v259
        %v378 = vpop.f32.mrb[0].mxu0
        %v379 = vadd.f32 0.0, %v378
        %v380 = vpop.f32.mrb[0].mxu0
        %381 = vmatprep.mubr.f32.mxu0 0.0
        %382 = vmatmul.mubr.f32.gmra.mrb[0].mxu0 %v262
        %v383 = vpop.f32.mrb[0].mxu0
        %v384 = vadd.f32 0.0, %v383
        %v385 = vpop.f32.mrb[0].mxu0
        %386 = vmatprep.mubr.f32.mxu0 0.0
        %387 = vmatmul.mubr.f32.gmra.mrb[0].mxu0 %v265
        %v388 = vpop.f32.mrb[0].mxu0
        %v389 = vadd.f32 0.0, %v388
        %v390 = vpop.f32.mrb[0].mxu0
        %391 = vmatprep.mubr.f32.mxu0 0.0
        %392 = vmatmul.mubr.f32.gmra.mrb[0].mxu0 %v268
        %v393 = vpop.f32.mrb[0].mxu0
        %v394 = vadd.f32 0.0, %v393
        %v395 = vpop.f32.mrb[0].mxu0
        %396 = vmatprep.mubr.f32.mxu0 0.0
        %397 = vmatmul.mubr.f32.gmra.mrb[0].mxu0 %v271
        %v398 = vpop.f32.mrb[0].mxu0
        %v399 = vadd.f32 0.0, %v398
        %v400 = vpop.f32.mrb[0].mxu0
        %401 = vmatprep.mubr.f32.mxu0 0.0
        %402 = vmatmul.mubr.f32.gmra.mrb[0].mxu0 %v274
        %v403 = vpop.f32.mrb[0].mxu0
        %v404 = vadd.f32 0.0, %v403
        %v405 = vpop.f32.mrb[0].mxu0
        %406 = vmatprep.mubr.f32.mxu0 0.0
        %407 = vmatmul.mubr.f32.gmra.mrb[0].mxu0 %v277
        %v408 = vpop.f32.mrb[0].mxu0
        %v409 = vadd.f32 0.0, %v408
        %v410 = vpop.f32.mrb[0].mxu0
        %411 = vmatprep.mubr.f32.mxu0 0.0
        %412 = vmatmul.mubr.f32.gmra.mrb[0].mxu0 %v280
        %v413 = vpop.f32.mrb[0].mxu0
        %v414 = vadd.f32 0.0, %v413
        %v415 = vpop.f32.mrb[0].mxu0
        %416 = vmatprep.mubr.f32.mxu0 0.0
        %417 = vmatmul.mubr.f32.gmra.mrb[0].mxu0 %v283
        %v418 = vpop.f32.mrb[0].mxu0
        %v419 = vadd.f32 0.0, %v418
        %v420 = vpop.f32.mrb[0].mxu0
        %421 = vmatprep.mubr.f32.mxu0 0.0
        %422 = vmatmul.mubr.f32.gmra.mrb[0].mxu0 %v286
        %v423 = vpop.f32.mrb[0].mxu0
        %v424 = vadd.f32 0.0, %v423
        %v425 = vpop.f32.mrb[0].mxu0
        %426 = vmatprep.mubr.f32.mxu0 0.0
        %427 = vmatmul.mubr.f32.gmra.mrb[0].mxu0 %v289
        %v428 = vpop.f32.mrb[0].mxu0
        %v429 = vadd.f32 0.0, %v428
        %v430 = vpop.f32.mrb[0].mxu0
        %431 = vmatprep.mubr.f32.mxu0 0.0
        %432 = vmatmul.mubr.f32.gmra.mrb[0].mxu0 %v292
        %v433 = vpop.f32.mrb[0].mxu0
        %v434 = vadd.f32 0.0, %v433
        %v435 = vpop.f32.mrb[0].mxu0
        %436 = vmatprep.mubr.f32.mxu0 0.0
        %437 = vmatmul.mubr.f32.gmra.mrb[0].mxu0 %v295
        %v438 = vpop.f32.mrb[0].mxu0
        %v439 = vadd.f32 0.0, %v438
        %v440 = vpop.f32.mrb[0].mxu0
        %441 = vdwg.mxu0
        %443 = vset.pattern.permute.xlu0 3
        %444 = vperm.xlu0 %443, %v210
        %v445 = vpop.permute.xlu0 %444
        %448 = vset.pattern.permute.xlu0 3
        %449 = vperm.xlu0 %448, %v211
        %v450 = vpop.permute.xlu0 %449
        %453 = vset.pattern.permute.xlu0 3
        %454 = vperm.xlu0 %453, %v212
        %v455 = vpop.permute.xlu0 %454
        %458 = vset.pattern.permute.xlu0 3
        %459 = vperm.xlu0 %458, %v213
        %v460 = vpop.permute.xlu0 %459
        %463 = vset.pattern.permute.xlu0 3
        %464 = vperm.xlu0 %463, %v214
        %v465 = vpop.permute.xlu0 %464
        %468 = vset.pattern.permute.xlu0 3
        %469 = vperm.xlu0 %468, %v215
        %v470 = vpop.permute.xlu0 %469
        %473 = vset.pattern.permute.xlu0 3
        %474 = vperm.xlu0 %473, %v216
        %v475 = vpop.permute.xlu0 %474
        %478 = vset.pattern.permute.xlu0 3
        %479 = vperm.xlu0 %478, %v217
        %v480 = vpop.permute.xlu0 %479
        %483 = vset.pattern.permute.xlu0 3
        %484 = vperm.xlu0 %483, %v218
        %v485 = vpop.permute.xlu0 %484
        %488 = vset.pattern.permute.xlu0 3
        %489 = vperm.xlu0 %488, %v219
        %v490 = vpop.permute.xlu0 %489
        %493 = vset.pattern.permute.xlu0 3
        %494 = vperm.xlu0 %493, %v220
        %v495 = vpop.permute.xlu0 %494
        %498 = vset.pattern.permute.xlu0 3
        %499 = vperm.xlu0 %498, %v221
        %v500 = vpop.permute.xlu0 %499
        %503 = vset.pattern.permute.xlu0 3
        %504 = vperm.xlu0 %503, %v222
        %v505 = vpop.permute.xlu0 %504
        %508 = vset.pattern.permute.xlu0 3
        %509 = vperm.xlu0 %508, %v223
        %v510 = vpop.permute.xlu0 %509
        %513 = vset.pattern.permute.xlu0 3
        %514 = vperm.xlu0 %513, %v224
        %v515 = vpop.permute.xlu0 %514
        %518 = vset.pattern.permute.xlu0 3
        %519 = vperm.xlu0 %518, %v225
        %v520 = vpop.permute.xlu0 %519
        %v522 = vlaneseq
        %v523 = vshrl.u32 %v522, 7
        %v524 = vsub.s32 3, %v523
        %v525 = vrot.slane %v226, %v524
        %v526 = vadd.f32 %v445, %v525
        %v527 = vadd.f32 %v450, %v525
        %v528 = vadd.f32 %v455, %v525
        %v529 = vadd.f32 %v460, %v525
        %v530 = vadd.f32 %v465, %v525
        %v531 = vadd.f32 %v470, %v525
        %v532 = vadd.f32 %v475, %v525
        %v533 = vadd.f32 %v480, %v525
        %v534 = vadd.f32 %v485, %v525
        %v535 = vadd.f32 %v490, %v525
        %v536 = vadd.f32 %v495, %v525
        %v537 = vadd.f32 %v500, %v525
        %v538 = vadd.f32 %v505, %v525
        %v539 = vadd.f32 %v510, %v525
        %v540 = vadd.f32 %v515, %v525
        %v541 = vadd.f32 %v520, %v525
        %v542 = vmul.f32 %v364, 2.0
        %v543 = vmul.f32 %v369, 2.0
        %v544 = vmul.f32 %v374, 2.0
        %v545 = vmul.f32 %v379, 2.0
        %v546 = vmul.f32 %v384, 2.0
        %v547 = vmul.f32 %v389, 2.0
        %v548 = vmul.f32 %v394, 2.0
        %v549 = vmul.f32 %v399, 2.0
        %v550 = vmul.f32 %v404, 2.0
        %v551 = vmul.f32 %v409, 2.0
        %v552 = vmul.f32 %v414, 2.0
        %v553 = vmul.f32 %v419, 2.0
        %v554 = vmul.f32 %v424, 2.0
        %v555 = vmul.f32 %v429, 2.0
        %v556 = vmul.f32 %v434, 2.0
        %v557 = vmul.f32 %v439, 2.0
        %v558 = vsub.f32 %v526, %v542
        %v559 = vsub.f32 %v527, %v543
        %v560 = vsub.f32 %v528, %v544
        %v561 = vsub.f32 %v529, %v545
        %v562 = vsub.f32 %v530, %v546
        %v563 = vsub.f32 %v531, %v547
        %v564 = vsub.f32 %v532, %v548
        %v565 = vsub.f32 %v533, %v549
        %v566 = vsub.f32 %v534, %v550
        %v567 = vsub.f32 %v535, %v551
        %v568 = vsub.f32 %v536, %v552
        %v569 = vsub.f32 %v537, %v553
        %v570 = vsub.f32 %v538, %v554
        %v571 = vsub.f32 %v539, %v555
        %v572 = vsub.f32 %v540, %v556
        %v573 = vsub.f32 %v541, %v557
        %v574 = vmax.f32 %v558, 0.0
        %v575 = vmax.f32 %v559, 0.0
        %v576 = vmax.f32 %v560, 0.0
        %v577 = vmax.f32 %v561, 0.0
        %v578 = vmax.f32 %v562, 0.0
        %v579 = vmax.f32 %v563, 0.0
        %v580 = vmax.f32 %v564, 0.0
        %v581 = vmax.f32 %v565, 0.0
        %v582 = vmax.f32 %v566, 0.0
        %v583 = vmax.f32 %v567, 0.0
        %v584 = vmax.f32 %v568, 0.0
        %v585 = vmax.f32 %v569, 0.0
        %v586 = vmax.f32 %v570, 0.0
        %v587 = vmax.f32 %v571, 0.0
        %v588 = vmax.f32 %v572, 0.0
        %v589 = vmax.f32 %v573, 0.0
        %vm590 = vcmp.gt.f32.partialorder %v210, 0.5
        %vm591 = vcmp.gt.f32.partialorder %v211, 0.5
        %vm592 = vcmp.gt.f32.partialorder %v212, 0.5
        %vm593 = vcmp.gt.f32.partialorder %v213, 0.5
        %vm594 = vcmp.gt.f32.partialorder %v214, 0.5
        %vm595 = vcmp.gt.f32.partialorder %v215, 0.5
        %vm596 = vcmp.gt.f32.partialorder %v216, 0.5
        %vm597 = vcmp.gt.f32.partialorder %v217, 0.5
        %vm598 = vcmp.gt.f32.partialorder %v218, 0.5
        %vm599 = vcmp.gt.f32.partialorder %v219, 0.5
        %vm600 = vcmp.gt.f32.partialorder %v220, 0.5
        %vm601 = vcmp.gt.f32.partialorder %v221, 0.5
        %vm602 = vcmp.gt.f32.partialorder %v222, 0.5
        %vm603 = vcmp.gt.f32.partialorder %v223, 0.5
        %vm604 = vcmp.gt.f32.partialorder %v224, 0.5
        %vm605 = vcmp.gt.f32.partialorder %v225, 0.5
        %vm606 = vcmp.gt.f32.partialorder %v226, 0.5
        %v607 = vsel %vm606, 1, 0
        %v608 = vlaneseq
        %v609 = vshrl.u32 %v608, 7
        %v610 = vsub.s32 4, %v609
        %v611 = vrot.slane %v607, %v610
        %vm612 = vcmp.eq.s32.totalorder %v611, 1
        %v613 = vsel %vm590, 1, 0
        %v614 = vsel %vm591, 1, 0
        %v615 = vsel %vm592, 1, 0
        %v616 = vsel %vm593, 1, 0
        %v617 = vsel %vm594, 1, 0
        %v618 = vsel %vm595, 1, 0
        %v619 = vsel %vm596, 1, 0
        %v620 = vsel %vm597, 1, 0
        %v621 = vsel %vm598, 1, 0
        %v622 = vsel %vm599, 1, 0
        %v623 = vsel %vm600, 1, 0
        %v624 = vsel %vm601, 1, 0
        %v625 = vsel %vm602, 1, 0
        %v626 = vsel %vm603, 1, 0
        %v627 = vsel %vm604, 1, 0
        %v628 = vsel %vm605, 1, 0
        %629 = vset.pattern.permute.xlu0 5
        %630 = vperm.xlu0 %629, %v613
        %v631 = vpop.permute.xlu0 %630
        %632 = vset.pattern.permute.xlu0 5
        %633 = vperm.xlu0 %632, %v614
        %v634 = vpop.permute.xlu0 %633
        %635 = vset.pattern.permute.xlu0 5
        %636 = vperm.xlu0 %635, %v615
        %v637 = vpop.permute.xlu0 %636
        %638 = vset.pattern.permute.xlu0 5
        %639 = vperm.xlu0 %638, %v616
        %v640 = vpop.permute.xlu0 %639
        %641 = vset.pattern.permute.xlu0 5
        %642 = vperm.xlu0 %641, %v617
        %v643 = vpop.permute.xlu0 %642
        %644 = vset.pattern.permute.xlu0 5
        %645 = vperm.xlu0 %644, %v618
        %v646 = vpop.permute.xlu0 %645
        %647 = vset.pattern.permute.xlu0 5
        %648 = vperm.xlu0 %647, %v619
        %v649 = vpop.permute.xlu0 %648
        %650 = vset.pattern.permute.xlu0 5
        %651 = vperm.xlu0 %650, %v620
        %v652 = vpop.permute.xlu0 %651
        %653 = vset.pattern.permute.xlu0 5
        %654 = vperm.xlu0 %653, %v621
        %v655 = vpop.permute.xlu0 %654
        %656 = vset.pattern.permute.xlu0 5
        %657 = vperm.xlu0 %656, %v622
        %v658 = vpop.permute.xlu0 %657
        %659 = vset.pattern.permute.xlu0 5
        %660 = vperm.xlu0 %659, %v623
        %v661 = vpop.permute.xlu0 %660
        %662 = vset.pattern.permute.xlu0 5
        %663 = vperm.xlu0 %662, %v624
        %v664 = vpop.permute.xlu0 %663
        %665 = vset.pattern.permute.xlu0 5
        %666 = vperm.xlu0 %665, %v625
        %v667 = vpop.permute.xlu0 %666
        %668 = vset.pattern.permute.xlu0 5
        %669 = vperm.xlu0 %668, %v626
        %v670 = vpop.permute.xlu0 %669
        %671 = vset.pattern.permute.xlu0 5
        %672 = vperm.xlu0 %671, %v627
        %v673 = vpop.permute.xlu0 %672
        %674 = vset.pattern.permute.xlu0 5
        %675 = vperm.xlu0 %674, %v628
        %v676 = vpop.permute.xlu0 %675
        %vm677 = vcmp.eq.s32.totalorder %v631, 1
        %vm678 = vcmp.eq.s32.totalorder %v634, 1
        %vm679 = vcmp.eq.s32.totalorder %v637, 1
        %vm680 = vcmp.eq.s32.totalorder %v640, 1
        %vm681 = vcmp.eq.s32.totalorder %v643, 1
        %vm682 = vcmp.eq.s32.totalorder %v646, 1
        %vm683 = vcmp.eq.s32.totalorder %v649, 1
        %vm684 = vcmp.eq.s32.totalorder %v652, 1
        %vm685 = vcmp.eq.s32.totalorder %v655, 1
        %vm686 = vcmp.eq.s32.totalorder %v658, 1
        %vm687 = vcmp.eq.s32.totalorder %v661, 1
        %vm688 = vcmp.eq.s32.totalorder %v664, 1
        %vm689 = vcmp.eq.s32.totalorder %v667, 1
        %vm690 = vcmp.eq.s32.totalorder %v670, 1
        %vm691 = vcmp.eq.s32.totalorder %v673, 1
        %vm692 = vcmp.eq.s32.totalorder %v676, 1
        %vm693 = vmand %vm612, %vm677
        %vm694 = vmand %vm612, %vm678
        %vm695 = vmand %vm612, %vm679
        %vm696 = vmand %vm612, %vm680
        %vm697 = vmand %vm612, %vm681
        %vm698 = vmand %vm612, %vm682
        %vm699 = vmand %vm612, %vm683
        %vm700 = vmand %vm612, %vm684
        %vm701 = vmand %vm612, %vm685
        %vm702 = vmand %vm612, %vm686
        %vm703 = vmand %vm612, %vm687
        %vm704 = vmand %vm612, %vm688
        %vm705 = vmand %vm612, %vm689
        %vm706 = vmand %vm612, %vm690
        %vm707 = vmand %vm612, %vm691
        %vm708 = vmand %vm612, %vm692
        %709 = vset.pattern.permute.xlu0 4
        %710 = vperm.xlu0 %709, %v613
        %v711 = vpop.permute.xlu0 %710
        %712 = vset.pattern.permute.xlu0 4
        %713 = vperm.xlu0 %712, %v614
        %v714 = vpop.permute.xlu0 %713
        %715 = vset.pattern.permute.xlu0 4
        %716 = vperm.xlu0 %715, %v615
        %v717 = vpop.permute.xlu0 %716
        %718 = vset.pattern.permute.xlu0 4
        %719 = vperm.xlu0 %718, %v616
        %v720 = vpop.permute.xlu0 %719
        %721 = vset.pattern.permute.xlu0 4
        %722 = vperm.xlu0 %721, %v617
        %v723 = vpop.permute.xlu0 %722
        %724 = vset.pattern.permute.xlu0 4
        %725 = vperm.xlu0 %724, %v618
        %v726 = vpop.permute.xlu0 %725
        %727 = vset.pattern.permute.xlu0 4
        %728 = vperm.xlu0 %727, %v619
        %v729 = vpop.permute.xlu0 %728
        %730 = vset.pattern.permute.xlu0 4
        %731 = vperm.xlu0 %730, %v620
        %v732 = vpop.permute.xlu0 %731
        %733 = vset.pattern.permute.xlu0 4
        %734 = vperm.xlu0 %733, %v621
        %v735 = vpop.permute.xlu0 %734
        %736 = vset.pattern.permute.xlu0 4
        %737 = vperm.xlu0 %736, %v622
        %v738 = vpop.permute.xlu0 %737
        %739 = vset.pattern.permute.xlu0 4
        %740 = vperm.xlu0 %739, %v623
        %v741 = vpop.permute.xlu0 %740
        %742 = vset.pattern.permute.xlu0 4
        %743 = vperm.xlu0 %742, %v624
        %v744 = vpop.permute.xlu0 %743
        %745 = vset.pattern.permute.xlu0 4
        %746 = vperm.xlu0 %745, %v625
        %v747 = vpop.permute.xlu0 %746
        %748 = vset.pattern.permute.xlu0 4
        %749 = vperm.xlu0 %748, %v626
        %v750 = vpop.permute.xlu0 %749
        %751 = vset.pattern.permute.xlu0 4
        %752 = vperm.xlu0 %751, %v627
        %v753 = vpop.permute.xlu0 %752
        %754 = vset.pattern.permute.xlu0 4
        %755 = vperm.xlu0 %754, %v628
        %v756 = vpop.permute.xlu0 %755
        %vm757 = vcmp.eq.s32.totalorder %v711, 1
        %vm758 = vcmp.eq.s32.totalorder %v714, 1
        %vm759 = vcmp.eq.s32.totalorder %v717, 1
        %vm760 = vcmp.eq.s32.totalorder %v720, 1
        %vm761 = vcmp.eq.s32.totalorder %v723, 1
        %vm762 = vcmp.eq.s32.totalorder %v726, 1
        %vm763 = vcmp.eq.s32.totalorder %v729, 1
        %vm764 = vcmp.eq.s32.totalorder %v732, 1
        %vm765 = vcmp.eq.s32.totalorder %v735, 1
        %vm766 = vcmp.eq.s32.totalorder %v738, 1
        %vm767 = vcmp.eq.s32.totalorder %v741, 1
        %vm768 = vcmp.eq.s32.totalorder %v744, 1
        %vm769 = vcmp.eq.s32.totalorder %v747, 1
        %vm770 = vcmp.eq.s32.totalorder %v750, 1
        %vm771 = vcmp.eq.s32.totalorder %v753, 1
        %vm772 = vcmp.eq.s32.totalorder %v756, 1
        %v773 = vlaneseq
        %v774 = vshrl.u32 %v773, 7
        %v775 = vsub.s32 5, %v774
        %v776 = vrot.slane %v607, %v775
        %vm777 = vcmp.eq.s32.totalorder %v776, 1
        %vm778 = vmand %vm757, %vm777
        %vm779 = vmand %vm758, %vm777
        %vm780 = vmand %vm759, %vm777
        %vm781 = vmand %vm760, %vm777
        %vm782 = vmand %vm761, %vm777
        %vm783 = vmand %vm762, %vm777
        %vm784 = vmand %vm763, %vm777
        %vm785 = vmand %vm764, %vm777
        %vm786 = vmand %vm765, %vm777
        %vm787 = vmand %vm766, %vm777
        %vm788 = vmand %vm767, %vm777
        %vm789 = vmand %vm768, %vm777
        %vm790 = vmand %vm769, %vm777
        %vm791 = vmand %vm770, %vm777
        %vm792 = vmand %vm771, %vm777
        %vm793 = vmand %vm772, %vm777
        %vm794 = vmxor %vm778, 1
        %vm795 = vmxor %vm779, 1
        %vm796 = vmxor %vm780, 1
        %vm797 = vmxor %vm781, 1
        %vm798 = vmxor %vm782, 1
        %vm799 = vmxor %vm783, 1
        %vm800 = vmxor %vm784, 1
        %vm801 = vmxor %vm785, 1
        %vm802 = vmxor %vm786, 1
        %vm803 = vmxor %vm787, 1
        %vm804 = vmxor %vm788, 1
        %vm805 = vmxor %vm789, 1
        %vm806 = vmxor %vm790, 1
        %vm807 = vmxor %vm791, 1
        %vm808 = vmxor %vm792, 1
        %vm809 = vmxor %vm793, 1
        %s810 = smul.u32 %s22, 128
        %s811 = smul.u32 %s23, 128
        %v812 = vlaneseq
        %v813 = vshrl.u32 %v812, 7
        %v814 = vadd.s32 %v813, 8
        %v815 = vadd.s32 %v813, 16
        %v816 = vadd.s32 %v813, 24
        %v817 = vadd.s32 %v813, 32
        %v818 = vadd.s32 %v813, 40
        %v819 = vadd.s32 %v813, 48
        %v820 = vadd.s32 %v813, 56
        %v821 = vadd.s32 %v813, 64
        %v822 = vadd.s32 %v813, 72
        %v823 = vadd.s32 %v813, 80
        %v824 = vadd.s32 %v813, 88
        %v825 = vadd.s32 %v813, 96
        %v826 = vadd.s32 %v813, 104
        %v827 = vadd.s32 %v813, 112
        %v828 = vadd.s32 %v813, 120
        %v829 = vstv %s810
        %v830 = vadd.s32 %v813, %v829
        %v831 = vadd.s32 %v814, %v829
        %v832 = vadd.s32 %v815, %v829
        %v833 = vadd.s32 %v816, %v829
        %v834 = vadd.s32 %v817, %v829
        %v835 = vadd.s32 %v818, %v829
        %v836 = vadd.s32 %v819, %v829
        %v837 = vadd.s32 %v820, %v829
        %v838 = vadd.s32 %v821, %v829
        %v839 = vadd.s32 %v822, %v829
        %v840 = vadd.s32 %v823, %v829
        %v841 = vadd.s32 %v824, %v829
        %v842 = vadd.s32 %v825, %v829
        %v843 = vadd.s32 %v826, %v829
        %v844 = vadd.s32 %v827, %v829
        %v845 = vadd.s32 %v828, %v829
        %v846 = vstv %s811
        %v847 = vadd.s32 %v228, %v846
        %vm848 = vcmp.gt.s32.totalorder %v847, %v830
        %vm849 = vcmp.gt.s32.totalorder %v847, %v831
        %vm850 = vcmp.gt.s32.totalorder %v847, %v832
        %vm851 = vcmp.gt.s32.totalorder %v847, %v833
        %vm852 = vcmp.gt.s32.totalorder %v847, %v834
        %vm853 = vcmp.gt.s32.totalorder %v847, %v835
        %vm854 = vcmp.gt.s32.totalorder %v847, %v836
        %vm855 = vcmp.gt.s32.totalorder %v847, %v837
        %vm856 = vcmp.gt.s32.totalorder %v847, %v838
        %vm857 = vcmp.gt.s32.totalorder %v847, %v839
        %vm858 = vcmp.gt.s32.totalorder %v847, %v840
        %vm859 = vcmp.gt.s32.totalorder %v847, %v841
        %vm860 = vcmp.gt.s32.totalorder %v847, %v842
        %vm861 = vcmp.gt.s32.totalorder %v847, %v843
        %vm862 = vcmp.gt.s32.totalorder %v847, %v844
        %vm863 = vcmp.gt.s32.totalorder %v847, %v845
        %vm864 = vmor %vm693, %vm794
        %vm865 = vmor %vm694, %vm795
        %vm866 = vmor %vm695, %vm796
        %vm867 = vmor %vm696, %vm797
        %vm868 = vmor %vm697, %vm798
        %vm869 = vmor %vm698, %vm799
        %vm870 = vmor %vm699, %vm800
        %vm871 = vmor %vm700, %vm801
        %vm872 = vmor %vm701, %vm802
        %vm873 = vmor %vm702, %vm803
        %vm874 = vmor %vm703, %vm804
        %vm875 = vmor %vm704, %vm805
        %vm876 = vmor %vm705, %vm806
        %vm877 = vmor %vm706, %vm807
        %vm878 = vmor %vm707, %vm808
        %vm879 = vmor %vm708, %vm809
        %vm880 = vmand %vm848, %vm864
        %vm881 = vmand %vm849, %vm865
        %vm882 = vmand %vm850, %vm866
        %vm883 = vmand %vm851, %vm867
        %vm884 = vmand %vm852, %vm868
        %vm885 = vmand %vm853, %vm869
        %vm886 = vmand %vm854, %vm870
        %vm887 = vmand %vm855, %vm871
        %vm888 = vmand %vm856, %vm872
        %vm889 = vmand %vm857, %vm873
        %vm890 = vmand %vm858, %vm874
        %vm891 = vmand %vm859, %vm875
        %vm892 = vmand %vm860, %vm876
        %vm893 = vmand %vm861, %vm877
        %vm894 = vmand %vm862, %vm878
        %vm895 = vmand %vm863, %vm879
        %vm896 = vmxor %vm848, 1
        %vm897 = vmxor %vm849, 1
        %vm898 = vmxor %vm850, 1
        %vm899 = vmxor %vm851, 1
        %vm900 = vmxor %vm852, 1
        %vm901 = vmxor %vm853, 1
        %vm902 = vmxor %vm854, 1
        %vm903 = vmxor %vm855, 1
        %vm904 = vmxor %vm856, 1
        %vm905 = vmxor %vm857, 1
        %vm906 = vmxor %vm858, 1
        %vm907 = vmxor %vm859, 1
        %vm908 = vmxor %vm860, 1
        %vm909 = vmxor %vm861, 1
        %vm910 = vmxor %vm862, 1
        %vm911 = vmxor %vm863, 1
        %vm912 = vmand %vm896, %vm693
        %vm913 = vmand %vm897, %vm694
        %vm914 = vmand %vm898, %vm695
        %vm915 = vmand %vm899, %vm696
        %vm916 = vmand %vm900, %vm697
        %vm917 = vmand %vm901, %vm698
        %vm918 = vmand %vm902, %vm699
        %vm919 = vmand %vm903, %vm700
        %vm920 = vmand %vm904, %vm701
        %vm921 = vmand %vm905, %vm702
        %vm922 = vmand %vm906, %vm703
        %vm923 = vmand %vm907, %vm704
        %vm924 = vmand %vm908, %vm705
        %vm925 = vmand %vm909, %vm706
        %vm926 = vmand %vm910, %vm707
        %vm927 = vmand %vm911, %vm708
        %vm928 = vmand %vm912, %vm794
        %vm929 = vmand %vm913, %vm795
        %vm930 = vmand %vm914, %vm796
        %vm931 = vmand %vm915, %vm797
        %vm932 = vmand %vm916, %vm798
        %vm933 = vmand %vm917, %vm799
        %vm934 = vmand %vm918, %vm800
        %vm935 = vmand %vm919, %vm801
        %vm936 = vmand %vm920, %vm802
        %vm937 = vmand %vm921, %vm803
        %vm938 = vmand %vm922, %vm804
        %vm939 = vmand %vm923, %vm805
        %vm940 = vmand %vm924, %vm806
        %vm941 = vmand %vm925, %vm807
        %vm942 = vmand %vm926, %vm808
        %vm943 = vmand %vm927, %vm809
        %vm944 = vmor %vm880, %vm928
        %vm945 = vmor %vm881, %vm929
        %vm946 = vmor %vm882, %vm930
        %vm947 = vmor %vm883, %vm931
        %vm948 = vmor %vm884, %vm932
        %vm949 = vmor %vm885, %vm933
        %vm950 = vmor %vm886, %vm934
        %vm951 = vmor %vm887, %vm935
        %vm952 = vmor %vm888, %vm936
        %vm953 = vmor %vm889, %vm937
        %vm954 = vmor %vm890, %vm938
        %vm955 = vmor %vm891, %vm939
        %vm956 = vmor %vm892, %vm940
        %vm957 = vmor %vm893, %vm941
        %vm958 = vmor %vm894, %vm942
        %vm959 = vmor %vm895, %vm943
        %vm960 = vcmp.ne.s32.totalorder %v830, %v847
        %vm961 = vcmp.ne.s32.totalorder %v831, %v847
        %vm962 = vcmp.ne.s32.totalorder %v832, %v847
        %vm963 = vcmp.ne.s32.totalorder %v833, %v847
        %vm964 = vcmp.ne.s32.totalorder %v834, %v847
        %vm965 = vcmp.ne.s32.totalorder %v835, %v847
        %vm966 = vcmp.ne.s32.totalorder %v836, %v847
        %vm967 = vcmp.ne.s32.totalorder %v837, %v847
        %vm968 = vcmp.ne.s32.totalorder %v838, %v847
        %vm969 = vcmp.ne.s32.totalorder %v839, %v847
        %vm970 = vcmp.ne.s32.totalorder %v840, %v847
        %vm971 = vcmp.ne.s32.totalorder %v841, %v847
        %vm972 = vcmp.ne.s32.totalorder %v842, %v847
        %vm973 = vcmp.ne.s32.totalorder %v843, %v847
        %vm974 = vcmp.ne.s32.totalorder %v844, %v847
        %vm975 = vcmp.ne.s32.totalorder %v845, %v847
        %vm976 = vmand %vm944, %vm960
        %vm977 = vmand %vm945, %vm961
        %vm978 = vmand %vm946, %vm962
        %vm979 = vmand %vm947, %vm963
        %vm980 = vmand %vm948, %vm964
        %vm981 = vmand %vm949, %vm965
        %vm982 = vmand %vm950, %vm966
        %vm983 = vmand %vm951, %vm967
        %vm984 = vmand %vm952, %vm968
        %vm985 = vmand %vm953, %vm969
        %vm986 = vmand %vm954, %vm970
        %vm987 = vmand %vm955, %vm971
        %vm988 = vmand %vm956, %vm972
        %vm989 = vmand %vm957, %vm973
        %vm990 = vmand %vm958, %vm974
        %vm991 = vmand %vm959, %vm975
        %vm992 = vmxor %vm590, 1
        %vm993 = vmxor %vm591, 1
        %vm994 = vmxor %vm592, 1
        %vm995 = vmxor %vm593, 1
        %vm996 = vmxor %vm594, 1
        %vm997 = vmxor %vm595, 1
        %vm998 = vmxor %vm596, 1
        %vm999 = vmxor %vm597, 1
        %vm1000 = vmxor %vm598, 1
        %vm1001 = vmxor %vm599, 1
        %vm1002 = vmxor %vm600, 1
        %vm1003 = vmxor %vm601, 1
        %vm1004 = vmxor %vm602, 1
        %vm1005 = vmxor %vm603, 1
        %vm1006 = vmxor %vm604, 1
        %vm1007 = vmxor %vm605, 1
        %v1008 = vsel %vm992, 1, 0
        %v1009 = vsel %vm993, 1, 0
        %v1010 = vsel %vm994, 1, 0
        %v1011 = vsel %vm995, 1, 0
        %v1012 = vsel %vm996, 1, 0
        %v1013 = vsel %vm997, 1, 0
        %v1014 = vsel %vm998, 1, 0
        %v1015 = vsel %vm999, 1, 0
        %v1016 = vsel %vm1000, 1, 0
        %v1017 = vsel %vm1001, 1, 0
        %v1018 = vsel %vm1002, 1, 0
        %v1019 = vsel %vm1003, 1, 0
        %v1020 = vsel %vm1004, 1, 0
        %v1021 = vsel %vm1005, 1, 0
        %v1022 = vsel %vm1006, 1, 0
        %v1023 = vsel %vm1007, 1, 0
        %1024 = vset.pattern.permute.xlu0 6
        %1025 = vperm.xlu0 %1024, %v1008
        %v1026 = vpop.permute.xlu0 %1025
        %1027 = vset.pattern.permute.xlu0 6
        %1028 = vperm.xlu0 %1027, %v1009
        %v1029 = vpop.permute.xlu0 %1028
        %1030 = vset.pattern.permute.xlu0 6
        %1031 = vperm.xlu0 %1030, %v1010
        %v1032 = vpop.permute.xlu0 %1031
        %1033 = vset.pattern.permute.xlu0 6
        %1034 = vperm.xlu0 %1033, %v1011
        %v1035 = vpop.permute.xlu0 %1034
        %1036 = vset.pattern.permute.xlu0 6
        %1037 = vperm.xlu0 %1036, %v1012
        %v1038 = vpop.permute.xlu0 %1037
        %1039 = vset.pattern.permute.xlu0 6
        %1040 = vperm.xlu0 %1039, %v1013
        %v1041 = vpop.permute.xlu0 %1040
        %1042 = vset.pattern.permute.xlu0 6
        %1043 = vperm.xlu0 %1042, %v1014
        %v1044 = vpop.permute.xlu0 %1043
        %1045 = vset.pattern.permute.xlu0 6
        %1046 = vperm.xlu0 %1045, %v1015
        %v1047 = vpop.permute.xlu0 %1046
        %1048 = vset.pattern.permute.xlu0 6
        %1049 = vperm.xlu0 %1048, %v1016
        %v1050 = vpop.permute.xlu0 %1049
        %1051 = vset.pattern.permute.xlu0 6
        %1052 = vperm.xlu0 %1051, %v1017
        %v1053 = vpop.permute.xlu0 %1052
        %1054 = vset.pattern.permute.xlu0 6
        %1055 = vperm.xlu0 %1054, %v1018
        %v1056 = vpop.permute.xlu0 %1055
        %1057 = vset.pattern.permute.xlu0 6
        %1058 = vperm.xlu0 %1057, %v1019
        %v1059 = vpop.permute.xlu0 %1058
        %1060 = vset.pattern.permute.xlu0 6
        %1061 = vperm.xlu0 %1060, %v1020
        %v1062 = vpop.permute.xlu0 %1061
        %1063 = vset.pattern.permute.xlu0 6
        %1064 = vperm.xlu0 %1063, %v1021
        %v1065 = vpop.permute.xlu0 %1064
        %1066 = vset.pattern.permute.xlu0 6
        %1067 = vperm.xlu0 %1066, %v1022
        %v1068 = vpop.permute.xlu0 %1067
        %1069 = vset.pattern.permute.xlu0 6
        %1070 = vperm.xlu0 %1069, %v1023
        %v1071 = vpop.permute.xlu0 %1070
        %vm1072 = vcmp.eq.s32.totalorder %v1026, 1
        %vm1073 = vcmp.eq.s32.totalorder %v1029, 1
        %vm1074 = vcmp.eq.s32.totalorder %v1032, 1
        %vm1075 = vcmp.eq.s32.totalorder %v1035, 1
        %vm1076 = vcmp.eq.s32.totalorder %v1038, 1
        %vm1077 = vcmp.eq.s32.totalorder %v1041, 1
        %vm1078 = vcmp.eq.s32.totalorder %v1044, 1
        %vm1079 = vcmp.eq.s32.totalorder %v1047, 1
        %vm1080 = vcmp.eq.s32.totalorder %v1050, 1
        %vm1081 = vcmp.eq.s32.totalorder %v1053, 1
        %vm1082 = vcmp.eq.s32.totalorder %v1056, 1
        %vm1083 = vcmp.eq.s32.totalorder %v1059, 1
        %vm1084 = vcmp.eq.s32.totalorder %v1062, 1
        %vm1085 = vcmp.eq.s32.totalorder %v1065, 1
        %vm1086 = vcmp.eq.s32.totalorder %v1068, 1
        %vm1087 = vcmp.eq.s32.totalorder %v1071, 1
        %vm1088 = vmand %vm976, %vm1072
        %vm1089 = vmand %vm977, %vm1073
        %vm1090 = vmand %vm978, %vm1074
        %vm1091 = vmand %vm979, %vm1075
        %vm1092 = vmand %vm980, %vm1076
        %vm1093 = vmand %vm981, %vm1077
        %vm1094 = vmand %vm982, %vm1078
        %vm1095 = vmand %vm983, %vm1079
        %vm1096 = vmand %vm984, %vm1080
        %vm1097 = vmand %vm985, %vm1081
        %vm1098 = vmand %vm986, %vm1082
        %vm1099 = vmand %vm987, %vm1083
        %vm1100 = vmand %vm988, %vm1084
        %vm1101 = vmand %vm989, %vm1085
        %vm1102 = vmand %vm990, %vm1086
        %vm1103 = vmand %vm991, %vm1087
        %vm1104 = vmxor %vm606, 1
        %v1105 = vsel %vm1104, 1, 0
        %v1106 = vlaneseq
        %v1107 = vshrl.u32 %v1106, 7
        %v1108 = vsub.s32 6, %v1107
        %v1109 = vrot.slane %v1105, %v1108
        %vm1110 = vcmp.eq.s32.totalorder %v1109, 1
        %vm1111 = vmand %vm1088, %vm1110
        %vm1112 = vmand %vm1089, %vm1110
        %vm1113 = vmand %vm1090, %vm1110
        %vm1114 = vmand %vm1091, %vm1110
        %vm1115 = vmand %vm1092, %vm1110
        %vm1116 = vmand %vm1093, %vm1110
        %vm1117 = vmand %vm1094, %vm1110
        %vm1118 = vmand %vm1095, %vm1110
        %vm1119 = vmand %vm1096, %vm1110
        %vm1120 = vmand %vm1097, %vm1110
        %vm1121 = vmand %vm1098, %vm1110
        %vm1122 = vmand %vm1099, %vm1110
        %vm1123 = vmand %vm1100, %vm1110
        %vm1124 = vmand %vm1101, %vm1110
        %vm1125 = vmand %vm1102, %vm1110
        %vm1126 = vmand %vm1103, %vm1110
        %vm1127 = vcmp.le.f32.partialorder %v574, 49.0
        %vm1128 = vcmp.le.f32.partialorder %v575, 49.0
        %vm1129 = vcmp.le.f32.partialorder %v576, 49.0
        %vm1130 = vcmp.le.f32.partialorder %v577, 49.0
        %vm1131 = vcmp.le.f32.partialorder %v578, 49.0
        %vm1132 = vcmp.le.f32.partialorder %v579, 49.0
        %vm1133 = vcmp.le.f32.partialorder %v580, 49.0
        %vm1134 = vcmp.le.f32.partialorder %v581, 49.0
        %vm1135 = vcmp.le.f32.partialorder %v582, 49.0
        %vm1136 = vcmp.le.f32.partialorder %v583, 49.0
        %vm1137 = vcmp.le.f32.partialorder %v584, 49.0
        %vm1138 = vcmp.le.f32.partialorder %v585, 49.0
        %vm1139 = vcmp.le.f32.partialorder %v586, 49.0
        %vm1140 = vcmp.le.f32.partialorder %v587, 49.0
        %vm1141 = vcmp.le.f32.partialorder %v588, 49.0
        %vm1142 = vcmp.le.f32.partialorder %v589, 49.0
        %vm1143 = vmand %vm1111, %vm1127
        %vm1144 = vmand %vm1112, %vm1128
        %vm1145 = vmand %vm1113, %vm1129
        %vm1146 = vmand %vm1114, %vm1130
        %vm1147 = vmand %vm1115, %vm1131
        %vm1148 = vmand %vm1116, %vm1132
        %vm1149 = vmand %vm1117, %vm1133
        %vm1150 = vmand %vm1118, %vm1134
        %vm1151 = vmand %vm1119, %vm1135
        %vm1152 = vmand %vm1120, %vm1136
        %vm1153 = vmand %vm1121, %vm1137
        %vm1154 = vmand %vm1122, %vm1138
        %vm1155 = vmand %vm1123, %vm1139
        %vm1156 = vmand %vm1124, %vm1140
        %vm1157 = vmand %vm1125, %vm1141
        %vm1158 = vmand %vm1126, %vm1142
        %v1159 = vsel %vm1143, 1.0, 0.0
        %v1160 = vsel %vm1144, 1.0, 0.0
        %v1161 = vsel %vm1145, 1.0, 0.0
        %v1162 = vsel %vm1146, 1.0, 0.0
        %v1163 = vsel %vm1147, 1.0, 0.0
        %v1164 = vsel %vm1148, 1.0, 0.0
        %v1165 = vsel %vm1149, 1.0, 0.0
        %v1166 = vsel %vm1150, 1.0, 0.0
        %v1167 = vsel %vm1151, 1.0, 0.0
        %v1168 = vsel %vm1152, 1.0, 0.0
        %v1169 = vsel %vm1153, 1.0, 0.0
        %v1170 = vsel %vm1154, 1.0, 0.0
        %v1171 = vsel %vm1155, 1.0, 0.0
        %v1172 = vsel %vm1156, 1.0, 0.0
        %v1173 = vsel %vm1157, 1.0, 0.0
        %v1174 = vsel %vm1158, 1.0, 0.0
        %v1175 = vtrunc.f32 %v1159
        %v1176 = vtrunc.f32 %v1160
        %v1177 = vtrunc.f32 %v1161
        %v1178 = vtrunc.f32 %v1162
        %v1179 = vtrunc.f32 %v1163
        %v1180 = vtrunc.f32 %v1164
        %v1181 = vtrunc.f32 %v1165
        %v1182 = vtrunc.f32 %v1166
        %v1183 = vtrunc.f32 %v1167
        %v1184 = vtrunc.f32 %v1168
        %v1185 = vtrunc.f32 %v1169
        %v1186 = vtrunc.f32 %v1170
        %v1187 = vtrunc.f32 %v1171
        %v1188 = vtrunc.f32 %v1172
        %v1189 = vtrunc.f32 %v1173
        %v1190 = vtrunc.f32 %v1174
        %v1191 = vpack.c.f32.eXmY %v1175, %v1176, 312
        %v1195 = vpack.c.f32.eXmY %v1177, %v1178, 312
        %v1199 = vpack.c.b8 %v1195, %v1191
        %v1201 = vpack.c.f32.eXmY %v1179, %v1180, 312
        %v1205 = vpack.c.f32.eXmY %v1181, %v1182, 312
        %v1209 = vpack.c.b8 %v1205, %v1201
        %v1211 = vpack.c.f32.eXmY %v1183, %v1184, 312
        %v1215 = vpack.c.f32.eXmY %v1185, %v1186, 312
        %v1219 = vpack.c.b8 %v1215, %v1211
        %v1221 = vpack.c.f32.eXmY %v1187, %v1188, 312
        %v1225 = vpack.c.f32.eXmY %v1189, %v1190, 312
        %v1229 = vpack.c.b8 %v1225, %v1221
        %1231 = vst [vmem:[%s191] sm:$0xff] %v1199
        %1232 = vst [vmem:[%s191 + $0x8] sm:$0xff] %v1209
        %1233 = vst [vmem:[%s191 + $0x10] sm:$0xff] %v1219
        %1234 = vst [vmem:[%s191 + $0x18] sm:$0xff] %v1229
        %s1235 = sand.u32 %s103, 1
        %s1236 = scalar_lea.sflag [#allocation3], %s1235
        %s1237 = sand.u32 %s103, 1
        %s1238 = smul.addr %s1237, 32
        %s1239 = scalar_lea.vmem [#allocation2], %s1238
        // Predicated region
        $region29: #{tpu_custom_call.1} parent=27 // pred_check
          %p1240 = pneg %p113
        $region30: #{tpu_custom_call.1} parent=27 // pred_check_branch
          %1242 = sbr.rel (%p1240) target = $region32
        $region31: #{tpu_custom_call.1} parent=27 // pred_region
          %s1243 = smul.u32 4, %s22
          %s1245 = ssub.s32 512, 512
          %1246 = vsyncadd %s1236, %s1245
          %s1247 = sadd.s32 %s23, %s1243
          %s1248 = smul.addr %s21, 4
          %s1249 = sadd.s32 %s1247, %s1248
          %s1250 = smul.addr %s1249, 128
          %s1251 = scalar_lea.hbm %s2, %s1250
          %s1252 = sshll.u32 %s1239, 4
          %s1253 = int_to_ptr.vmem [resolvable:$true] %s1252
          %1258 = dma.vmem_to_hbm [thread:$0]  %s1253, 512, %s1251, %s1236, 128, 128, 8
        $region32: #{tpu_custom_call.1} parent=27 // pred_fallthru
          _
      $region28: #{tpu_custom_call.1} parent=5 // pred_fallthru
        _
      %p1259 = scmp.le.s32.totalorder 2, %s11
      // Predicated region
      $region33: #{tpu_custom_call.1} parent=5 // pred_check
        %p1260 = pneg %p1259
      $region34: #{tpu_custom_call.1} parent=5 // pred_check_branch
        %1262 = sbr.rel (%p1260) target = $region36
      $region35: #{tpu_custom_call.1} parent=5 // pred_region
        %s1263 = ssub.s32 %s11, 2
        // Predicated region
        $region37: #{tpu_custom_call.1} parent=35 // pred_check
          %p1264 = pneg %p119
        $region38: #{tpu_custom_call.1} parent=35 // pred_check_branch
          %1266 = sbr.rel (%p1264) target = $region40
        $region39: #{tpu_custom_call.1} parent=35 // pred_region
          %s1267 = sand.u32 %s104, 1
          %s1268 = scalar_lea.sflag [#allocation3], %s1267
          %s1269 = sand.u32 %s104, 1
          %s1270 = smul.addr %s1269, 32
          %s1271 = scalar_lea.vmem [#allocation2], %s1270
          %1272 = dma.done %s1268, 512
        $region40: #{tpu_custom_call.1} parent=35 // pred_fallthru
          _
      $region36: #{tpu_custom_call.1} parent=5 // pred_fallthru
        _
    $region6: #{tpu_custom_call.1} parent=1 // loop_footer
      %s15 = sadd.s32 1, %s11
    $region7: #{tpu_custom_call.1} parent=1 // loop_footer_branch
      %10 = sbr.rel target = $region3
    $region8: #{tpu_custom_call.1} parent=1 // loop_exit
      _
    %1273 = vsyncpa [#allocation3], 1
    %s1274 = scalar_lea.sflag [#allocation3], 1
    %1275 = vsyncpa %s1274, 1

</llo_original>
